<compile_context>
chip_gen: v6e
topology: v6e:2x2x1
jax: 0.10.0
libtpu: 0.0.40
codegen_flags: <defaults>
</compile_context>

<pallas_src>
import math
from functools import partial

import jax
import jax.numpy as jnp
from jax import lax
from jax.experimental import pallas as pl
from jax.experimental.pallas import tpu as pltpu


# ----------------------------------------------------------------------------
# Helpers
# ----------------------------------------------------------------------------
def _sublane_base(dtype):
    # f32 min tile is (8, 128); bf16 / fp8 pack along sublanes -> use 16.
    return 8 if jnp.dtype(dtype).itemsize >= 4 else 16


def _pick_tile(dim, cap, base):
    """Largest tile <= cap that divides dim and is a multiple of base, else dim."""
    if dim <= cap:
        return dim
    t = (cap // base) * base
    while t >= base:
        if dim % t == 0:
            return t
        t -= base
    return dim


def _vmem_limit(total_bytes):
    """Scoped-VMEM limit with headroom, derived from the actual chip's VMEM:
    ~92 MiB ceiling on 128 MiB parts (v5e/v6e), ~44 MiB on 64 MiB v7x."""
    try:
        cap = int(getattr(pltpu.get_tpu_info(), "vmem_capacity_bytes", 64 << 20))
    except Exception:  # pragma: no cover - be conservative if query fails
        cap = 64 << 20
    ceiling = (cap * 3) // 4 - (4 << 20)      # headroom for compiler scratch
    return int(min(max(total_bytes + (8 << 20), 16 << 20), max(ceiling, 16 << 20)))


# ----------------------------------------------------------------------------
# Tiled linear projection: y = x @ W + b      (x: (M, Din), W: (Din, Dout))
# grid = (M/tm, Dout/tn, Din/tk); f32 accumulator in VMEM scratch.
# ----------------------------------------------------------------------------
def _linear_kernel(x_ref, w_ref, b_ref, o_ref, acc_ref):
    @pl.when(pl.program_id(2) == 0)
    def _init():
        acc_ref[...] = jnp.zeros_like(acc_ref)

    # Source-dtype operands (f32 or bf16), f32 accumulation on the MXU.
    acc_ref[...] += jnp.dot(x_ref[...], w_ref[...],
                            preferred_element_type=jnp.float32)

    @pl.when(pl.program_id(2) == pl.num_programs(2) - 1)
    def _finalize():
        o_ref[...] = (acc_ref[...] + b_ref[...].astype(jnp.float32)).astype(o_ref.dtype)


def pallas_linear(x, w, b, *, tm_cap=512, tn_cap=512, tk_cap=512):
    M, Din = x.shape
    Dout = w.shape[1]
    isz = jnp.dtype(x.dtype).itemsize
    tm = _pick_tile(M, tm_cap, _sublane_base(x.dtype))
    tn = _pick_tile(Dout, tn_cap, 128)
    tk = _pick_tile(Din, tk_cap, 128)
    grid = (pl.cdiv(M, tm), pl.cdiv(Dout, tn), pl.cdiv(Din, tk))
    vmem = _vmem_limit(2 * isz * (tm * tk + tk * tn + tn + tm * tn) + 4 * tm * tn)
    return pl.pallas_call(
        _linear_kernel,
        out_shape=jax.ShapeDtypeStruct((M, Dout), x.dtype),
        grid=grid,
        in_specs=[
            pl.BlockSpec((tm, tk), lambda i, j, k: (i, k)),
            pl.BlockSpec((tk, tn), lambda i, j, k: (k, j)),
            pl.BlockSpec((1, tn), lambda i, j, k: (0, j)),
        ],
        out_specs=pl.BlockSpec((tm, tn), lambda i, j, k: (i, j)),
        scratch_shapes=[pltpu.VMEM((tm, tn), jnp.float32)],
        compiler_params=pltpu.CompilerParams(
            dimension_semantics=("parallel", "parallel", "arbitrary"),
            vmem_limit_bytes=vmem,
        ),
    )(x, w, b.reshape(1, Dout))


# ----------------------------------------------------------------------------
# Fused QKV projection with THREE outputs (self-attention fast path):
#   q, k, v = split(x @ [Wq|Wk|Wv] + [bq|bk|bv])
# The activation is read from HBM once and q/k/v are written directly as
# separate arrays, so no fused qkv buffer is ever materialized/re-sliced.
# grid = (M/tm, Din/tk).
# ----------------------------------------------------------------------------
def _qkv_linear_kernel(x_ref, w_ref, b_ref, q_ref, k_ref, v_ref, acc_ref, *, dq):
    @pl.when(pl.program_id(1) == 0)
    def _init():
        acc_ref[...] = jnp.zeros_like(acc_ref)

    acc_ref[...] += jnp.dot(x_ref[...], w_ref[...],
                            preferred_element_type=jnp.float32)

    @pl.when(pl.program_id(1) == pl.num_programs(1) - 1)
    def _finalize():
        y = acc_ref[...] + b_ref[...].astype(jnp.float32)
        q_ref[...] = y[:, :dq].astype(q_ref.dtype)
        k_ref[...] = y[:, dq:2 * dq].astype(k_ref.dtype)
        v_ref[...] = y[:, 2 * dq:].astype(v_ref.dtype)


def pallas_qkv_linear(x, w_qkv, b_qkv, dq, dv, *, tm_cap=512, tk_cap=512):
    M, Din = x.shape
    Dqkv = w_qkv.shape[1]                      # == 2*dq + dv
    isz = jnp.dtype(x.dtype).itemsize
    tm = _pick_tile(M, tm_cap, _sublane_base(x.dtype))
    tk = _pick_tile(Din, tk_cap, 128)
    grid = (pl.cdiv(M, tm), pl.cdiv(Din, tk))
    vmem = _vmem_limit(2 * isz * (tm * tk + tk * Dqkv + Dqkv + tm * Dqkv)
                       + 4 * tm * Dqkv)
    kernel = partial(_qkv_linear_kernel, dq=dq)
    return pl.pallas_call(
        kernel,
        out_shape=(jax.ShapeDtypeStruct((M, dq), x.dtype),
                   jax.ShapeDtypeStruct((M, dq), x.dtype),
                   jax.ShapeDtypeStruct((M, dv), x.dtype)),
        grid=grid,
        in_specs=[
            pl.BlockSpec((tm, tk), lambda i, k: (i, k)),
            pl.BlockSpec((tk, Dqkv), lambda i, k: (k, 0)),
            pl.BlockSpec((1, Dqkv), lambda i, k: (0, 0)),
        ],
        out_specs=(
            pl.BlockSpec((tm, dq), lambda i, k: (i, 0)),
            pl.BlockSpec((tm, dq), lambda i, k: (i, 0)),
            pl.BlockSpec((tm, dv), lambda i, k: (i, 0)),
        ),
        scratch_shapes=[pltpu.VMEM((tm, Dqkv), jnp.float32)],
        compiler_params=pltpu.CompilerParams(
            dimension_semantics=("parallel", "arbitrary"),
            vmem_limit_bytes=vmem,
        ),
    )(x, w_qkv, b_qkv.reshape(1, Dqkv))


# ----------------------------------------------------------------------------
# Flash-style multi-head attention core.
# Layout: q (B, nq, H*d_k), k (B, nk, H*d_k), v (B, nk, H*d_v) -> (B, nq, H*d_v)
# grid = (B, nq_tiles, nk_tiles); all heads processed per grid step.
# ----------------------------------------------------------------------------
def _mha_flash_kernel(q_ref, k_ref, v_ref, o_ref, q_sc, m_sc, l_sc, acc_sc,
                      *, H, d_k, d_v, scale):
    kv = pl.program_id(2)

    @pl.when(kv == 0)
    def _init():
        # Hoisted per-q-tile work: scale q once and cache it for the whole
        # kv sweep (removes a (tq, H*d_k) multiply + cast per kv step).
        q_sc[...] = (q_ref[0] * scale).astype(q_sc.dtype)
        m_sc[...] = jnp.full_like(m_sc, -jnp.inf)
        l_sc[...] = jnp.zeros_like(l_sc)
        acc_sc[...] = jnp.zeros_like(acc_sc)

    q_all = q_sc[...]                 # (tq, H*d_k)  source dtype, pre-scaled
    k_all = k_ref[0]                  # (tk, H*d_k)  source dtype
    v_all = v_ref[0]                  # (tk, H*d_v)  source dtype
    m_prev = m_sc[...]                # (tq, H)      f32
    l_prev = l_sc[...]                # (tq, H)      f32
    acc_prev = acc_sc[...]            # (tq, H*d_v)  f32

    m_new, l_new, acc_new = [], [], []
    for h in range(H):                # static unroll, H is small
        q = q_all[:, h * d_k:(h + 1) * d_k]           # (tq, d_k)
        k = k_all[:, h * d_k:(h + 1) * d_k]           # (tk, d_k)
        v = v_all[:, h * d_v:(h + 1) * d_v]           # (tk, d_v)

        # QK^T: contract the last axes directly (no explicit k.T / XLU
        # transpose); operands stay in the source dtype, f32 accumulation.
        s = lax.dot_general(q, k, (((1,), (1,)), ((), ())),
                            preferred_element_type=jnp.float32)   # (tq, tk)

        m_p = m_prev[:, h:h + 1]
        m_n = jnp.maximum(m_p, jnp.max(s, axis=-1, keepdims=True))
        alpha = jnp.exp(m_p - m_n)                                 # EUP
        p = jnp.exp(s - m_n)                                       # (tq, tk) f32
        l_n = alpha * l_prev[:, h:h + 1] + jnp.sum(p, axis=-1, keepdims=True)
        pv = jnp.dot(p.astype(v_all.dtype), v,
                     preferred_element_type=jnp.float32)           # (tq, d_v)
        acc_n = alpha * acc_prev[:, h * d_v:(h + 1) * d_v] + pv

        m_new.append(m_n)
        l_new.append(l_n)
        acc_new.append(acc_n)

    # One full-width store per scratch per kv step (instead of H masked
    # sub-128-lane stores per step); the concatenate is XLU/VPU work and
    # stays off the single vector-store slot.
    m_sc[...] = jnp.concatenate(m_new, axis=-1)
    l_sc[...] = jnp.concatenate(l_new, axis=-1)
    acc_sc[...] = jnp.concatenate(acc_new, axis=-1)

    @pl.when(kv == pl.num_programs(2) - 1)
    def _finalize():
        inv = pl.reciprocal(l_sc[...], approx=True)                # EUP slot
        acc_all = acc_sc[...]
        outs = [acc_all[:, h * d_v:(h + 1) * d_v] * inv[:, h:h + 1]
                for h in range(H)]
        # Single lane-dense store of the whole (tq, H*d_v) output block.
        o_ref[0] = jnp.concatenate(outs, axis=-1).astype(o_ref.dtype)


def pallas_multihead_attention(q, k, v, scale, *, H, d_k, d_v,
                               tq_cap=128, tk_cap=256):
    B, nq, _ = q.shape
    nk = k.shape[1]
    base = _sublane_base(q.dtype)
    tq = _pick_tile(nq, tq_cap, base)
    tk = _pick_tile(nk, tk_cap, base)
    grid = (B, pl.cdiv(nq, tq), pl.cdiv(nk, tk))
    isz = jnp.dtype(q.dtype).itemsize
    vmem = _vmem_limit(
        2 * isz * (tq * H * d_k + tk * H * d_k + tk * H * d_v + tq * H * d_v)
        + isz * tq * H * d_k                          # scaled-q scratch
        + 4 * (2 * tq * H + tq * H * d_v))            # m, l, acc scratch (f32)
    kernel = partial(_mha_flash_kernel, H=H, d_k=d_k, d_v=d_v, scale=float(scale))
    return pl.pallas_call(
        kernel,
        out_shape=jax.ShapeDtypeStruct((B, nq, H * d_v), q.dtype),
        grid=grid,
        in_specs=[
            pl.BlockSpec((1, tq, H * d_k), lambda b, qi, ki: (b, qi, 0)),
            pl.BlockSpec((1, tk, H * d_k), lambda b, qi, ki: (b, ki, 0)),
            pl.BlockSpec((1, tk, H * d_v), lambda b, qi, ki: (b, ki, 0)),
        ],
        out_specs=pl.BlockSpec((1, tq, H * d_v), lambda b, qi, ki: (b, qi, 0)),
        scratch_shapes=[
            pltpu.VMEM((tq, H * d_k), q.dtype),       # scaled-q cache
            pltpu.VMEM((tq, H), jnp.float32),         # running max (per head)
            pltpu.VMEM((tq, H), jnp.float32),         # running sum (per head)
            pltpu.VMEM((tq, H * d_v), jnp.float32),   # f32 output accumulator
        ],
        compiler_params=pltpu.CompilerParams(
            dimension_semantics=("parallel", "parallel", "arbitrary"),
            vmem_limit_bytes=vmem,
        ),
    )(q, k, v)


# ----------------------------------------------------------------------------
# Module wrapper
# ----------------------------------------------------------------------------
class ScaledDotProductAttentionPallas:
    def __init__(self, d_model, d_k, d_v, headers, dropout=0.0, seed=0,
                 dtype=jnp.float32):
        self.d_model, self.d_k, self.d_v, self.headers = d_model, d_k, d_v, headers
        self.dtype = dtype
        key = jax.random.PRNGKey(seed)
        kq, kk, kv, ko = jax.random.split(key, 4)
        # init_weights(): Linear weights ~ N(0, 0.1), biases = 0; stored (in, out).
        self.w_q = (0.1 * jax.random.normal(kq, (d_model, headers * d_k))).astype(dtype)
        self.w_k = (0.1 * jax.random.normal(kk, (d_model, headers * d_k))).astype(dtype)
        self.w_v = (0.1 * jax.random.normal(kv, (d_model, headers * d_v))).astype(dtype)
        self.b_q = jnp.zeros((headers * d_k,), dtype)
        self.b_k = jnp.zeros((headers * d_k,), dtype)
        self.b_v = jnp.zeros((headers * d_v,), dtype)
        # fc_o is defined in the PyTorch __init__ but never used in forward().
        self.w_o = (0.1 * jax.random.normal(ko, (headers * d_v, d_model))).astype(dtype)
        self.b_o = jnp.zeros((d_model,), dtype)
        # Fused QKV weights for the self-attention fast path (activation read once).
        self.w_qkv = jnp.concatenate([self.w_q, self.w_k, self.w_v], axis=1)
        self.b_qkv = jnp.concatenate([self.b_q, self.b_k, self.b_v], axis=0)

    def __call__(self, query, key, value, attention_mask=None, attention_scale=None):
        # attention_mask is unused in the reference forward(); dropout(0.0) = id.
        b_s, nq, _ = query.shape
        nk = key.shape[1]
        H, d_k, d_v = self.headers, self.d_k, self.d_v

        self_attn = (query is key) and (key is value)
        query = query.astype(self.dtype)
        if self_attn:
            key = value = query
        else:
            key = key.astype(self.dtype)
            value = value.astype(self.dtype)

        if self_attn:
            # Fused QKV projection with three separate outputs: the activation
            # is read from HBM once and no fused qkv array is materialized or
            # re-sliced in the wrapper (no extra HBM read+write pass).
            q, k, v = pallas_qkv_linear(query.reshape(b_s * nq, self.d_model),
                                        self.w_qkv, self.b_qkv,
                                        H * d_k, H * d_v)
        else:
            q = pallas_linear(query.reshape(b_s * nq, self.d_model), self.w_q, self.b_q)
            k = pallas_linear(key.reshape(b_s * nk, self.d_model), self.w_k, self.b_k)
            v = pallas_linear(value.reshape(b_s * nk, self.d_model), self.w_v, self.b_v)

        # Stay in (B, n, H*d) layout: heads are sliced on the lane axis inside
        # the attention kernel, so no HBM-materializing (0, 2, 1, 3) transposes
        # and the output is written directly in (B, nq, H*d_v) layout.
        q = q.reshape(b_s, nq, H * d_k)
        k = k.reshape(b_s, nk, H * d_k)
        v = v.reshape(b_s, nk, H * d_v)

        scale = 1.0 / math.sqrt(d_k)
        if attention_scale is not None:
            scale = scale * float(attention_scale)

        return pallas_multihead_attention(q, k, v, scale, H=H, d_k=d_k, d_v=d_v)


# ----------------------------------------------------------------------------
# Pure-JAX reference (for verification only; always computed in f32)
# ----------------------------------------------------------------------------
def reference_forward(mod, query, key, value, attention_scale=None):
    b_s, nq, _ = query.shape
    nk = key.shape[1]
    H, d_k, d_v = mod.headers, mod.d_k, mod.d_v
    f32 = jnp.float32
    w_q, w_k, w_v = mod.w_q.astype(f32), mod.w_k.astype(f32), mod.w_v.astype(f32)
    b_q, b_k, b_v = mod.b_q.astype(f32), mod.b_k.astype(f32), mod.b_v.astype(f32)
    query, key, value = query.astype(f32), key.astype(f32), value.astype(f32)
    q = (query @ w_q + b_q).reshape(b_s, nq, H, d_k).transpose(0, 2, 1, 3)
    k = (key @ w_k + b_k).reshape(b_s, nk, H, d_k).transpose(0, 2, 3, 1)
    v = (value @ w_v + b_v).reshape(b_s, nk, H, d_v).transpose(0, 2, 1, 3)
    att = jnp.matmul(q, k) / math.sqrt(d_k)
    if attention_scale is not None:
        att = att * attention_scale
    att = jax.nn.softmax(att, axis=-1)
    out = jnp.matmul(att, v).transpose(0, 2, 1, 3).reshape(b_s, nq, H * d_v)
    return out


if __name__ == "__main__":
    B, N, d_model, d_k, d_v, H = 2, 8, 32, 16, 16, 4

    mod = ScaledDotProductAttentionPallas(d_model, d_k, d_v, H, dropout=0.0, seed=0)

    key = jax.random.PRNGKey(0)
    kq, kk, kv = jax.random.split(key, 3)
    query = jax.random.normal(kq, (B, N, d_model), jnp.float32)
    keyt = jax.random.normal(kk, (B, N, d_model), jnp.float32)
    value = jax.random.normal(kv, (B, N, d_model), jnp.float32)

    # Cross-attention path (separate q/k/v projections), f32.
    out = jax.block_until_ready(mod(query, keyt, value))
    ref = reference_forward(mod, query, keyt, value)
    assert out.shape == (B, N, H * d_v), out.shape
    # Tolerance accounts for the approx (EUP) reciprocal in the softmax normalizer.
    assert jnp.allclose(out, ref, atol=1e-2, rtol=1e-2), \
        float(jnp.max(jnp.abs(out - ref)))

    # Self-attention path (fused three-output QKV projection) + attention_scale.
    out_sa = jax.block_until_ready(mod(query, query, query, attention_scale=2.0))
    ref_sa = reference_forward(mod, query, query, query, attention_scale=2.0)
    assert jnp.allclose(out_sa, ref_sa, atol=1e-2, rtol=1e-2), \
        float(jnp.max(jnp.abs(out_sa - ref_sa)))

    # bf16 path: weights + activations in bf16 feeding the MXU, f32 accumulation.
    mod16 = ScaledDotProductAttentionPallas(d_model, d_k, d_v, H, dropout=0.0,
                                            seed=0, dtype=jnp.bfloat16)
    out16 = jax.block_until_ready(mod16(query, query, query))
    ref16 = reference_forward(mod16, query, query, query)
    assert out16.dtype == jnp.bfloat16
    assert jnp.all(jnp.isfinite(out16.astype(jnp.float32)))
    assert jnp.allclose(out16.astype(jnp.float32), ref16, atol=1e-1, rtol=1e-1), \
        float(jnp.max(jnp.abs(out16.astype(jnp.float32) - ref16)))

    print("KERNEL_OK")
</pallas_src>

<mosaic_0001>
module attributes {stable_mosaic.version = 11 : i64} {
  func.func @_linear_kernel(%arg0: i32, %arg1: i32, %arg2: i32, %arg3: memref<16x32xf32, #tpu.memory_space<vmem>>, %arg4: memref<32x64xf32, #tpu.memory_space<vmem>>, %arg5: memref<1x64xf32, #tpu.memory_space<vmem>>, %arg6: memref<16x64xf32, #tpu.memory_space<vmem>>, %arg7: memref<16x64xf32, #tpu.memory_space<vmem>>) attributes {dimension_semantics = [#tpu.dimension_semantics<parallel>, #tpu.dimension_semantics<parallel>, #tpu.dimension_semantics<arbitrary>], iteration_bounds = array<i64: 1, 1, 1>, scalar_prefetch = 0 : i64, scratch_operands = 1 : i64, tpu.core_type = #tpu.core_type<tc>, window_params = [{transform_indices = @transform_0, window_bounds = array<i64: 16, 32>}, {transform_indices = @transform_1, window_bounds = array<i64: 32, 64>}, {transform_indices = @transform_2, window_bounds = array<i64: 1, 64>}, {transform_indices = @transform_3, window_bounds = array<i64: 16, 64>}]} {
    %c0_i32 = arith.constant 0 : i32
    %0 = arith.cmpi eq, %arg2, %c0_i32 : i32
    %1 = arith.extui %0 : i1 to i32
    %c0_i32_0 = arith.constant 0 : i32
    %2 = arith.cmpi ne, %1, %c0_i32_0 : i32
    scf.if %2 {
      %cst_10 = arith.constant 0.000000e+00 : f32
      %12 = vector.broadcast %cst_10 : f32 to vector<16x64xf32>
      %c0_11 = arith.constant 0 : index
      %c0_12 = arith.constant 0 : index
      %13 = vector.load %arg7[%c0_11, %c0_12] : memref<16x64xf32, #tpu.memory_space<vmem>>, vector<16x64xf32>
      tpu.vector_store %arg7[%c0_11, %c0_12], %12 {strides = array<i32>} : memref<16x64xf32, #tpu.memory_space<vmem>>, vector<16x64xf32>,
    } else {
    }
    %c0 = arith.constant 0 : index
    %c0_1 = arith.constant 0 : index
    %3 = vector.load %arg7[%c0, %c0_1] : memref<16x64xf32, #tpu.memory_space<vmem>>, vector<16x64xf32>
    %c0_2 = arith.constant 0 : index
    %c0_3 = arith.constant 0 : index
    %4 = vector.load %arg3[%c0_2, %c0_3] : memref<16x32xf32, #tpu.memory_space<vmem>>, vector<16x32xf32>
    %c0_4 = arith.constant 0 : index
    %c0_5 = arith.constant 0 : index
    %5 = vector.load %arg4[%c0_4, %c0_5] : memref<32x64xf32, #tpu.memory_space<vmem>>, vector<32x64xf32>
    %cst = arith.constant dense<0.000000e+00> : vector<16x64xf32>
    %6 = tpu.matmul %4, %5, %cst {dimension_numbers = #tpu.dot_dimension_numbers<[1], [0], [0], [1], [0, 0, 1, 1], [], []>} : vector<16x32xf32>, vector<32x64xf32>, vector<16x64xf32> -> vector<16x64xf32>
    %7 = arith.addf %3, %6 : vector<16x64xf32>
    %c0_6 = arith.constant 0 : index
    %c0_7 = arith.constant 0 : index
    %8 = vector.load %arg7[%c0_6, %c0_7] : memref<16x64xf32, #tpu.memory_space<vmem>>, vector<16x64xf32>
    tpu.vector_store %arg7[%c0_6, %c0_7], %7 {strides = array<i32>} : memref<16x64xf32, #tpu.memory_space<vmem>>, vector<16x64xf32>,
    %c0_i32_8 = arith.constant 0 : i32
    %9 = arith.cmpi eq, %arg2, %c0_i32_8 : i32
    %10 = arith.extui %9 : i1 to i32
    %c0_i32_9 = arith.constant 0 : i32
    %11 = arith.cmpi ne, %10, %c0_i32_9 : i32
    scf.if %11 {
      %c0_10 = arith.constant 0 : index
      %c0_11 = arith.constant 0 : index
      %12 = vector.load %arg7[%c0_10, %c0_11] : memref<16x64xf32, #tpu.memory_space<vmem>>, vector<16x64xf32>
      %c0_12 = arith.constant 0 : index
      %c0_13 = arith.constant 0 : index
      %13 = vector.load %arg5[%c0_12, %c0_13] : memref<1x64xf32, #tpu.memory_space<vmem>>, vector<1x64xf32>
      %14 = vector.broadcast %13 : vector<1x64xf32> to vector<16x64xf32>
      %15 = arith.addf %12, %14 : vector<16x64xf32>
      %c0_14 = arith.constant 0 : index
      %c0_15 = arith.constant 0 : index
      %16 = vector.load %arg6[%c0_14, %c0_15] : memref<16x64xf32, #tpu.memory_space<vmem>>, vector<16x64xf32>
      tpu.vector_store %arg6[%c0_14, %c0_15], %15 {strides = array<i32>} : memref<16x64xf32, #tpu.memory_space<vmem>>, vector<16x64xf32>,
    } else {
    }
    return
  }
  func.func @transform_0(%arg0: i32, %arg1: i32, %arg2: i32) -> (i32, i32) {
    %c0_i32 = arith.constant 0 : i32
    return %arg0, %arg2 : i32, i32
  }
  func.func @transform_1(%arg0: i32, %arg1: i32, %arg2: i32) -> (i32, i32) {
    %c0_i32 = arith.constant 0 : i32
    return %arg2, %arg1 : i32, i32
  }
  func.func @transform_2(%arg0: i32, %arg1: i32, %arg2: i32) -> (i32, i32) {
    %c0_i32 = arith.constant 0 : i32
    %c0_i32_0 = arith.constant 0 : i32
    return %c0_i32, %arg1 : i32, i32
  }
  func.func @transform_3(%arg0: i32, %arg1: i32, %arg2: i32) -> (i32, i32) {
    %c0_i32 = arith.constant 0 : i32
    return %arg0, %arg1 : i32, i32
  }
}

</mosaic_0001>

<llo_original>
// kernel: tpu_custom_call.1
$region0: #{tpu_custom_call.1}
  #allocation0 [shape = 'u32[]', space=smem, size = 0x4, offset = 0x4, fixed_abs, tag = 'smem constant byte address 0x4 - core index']
  #allocation1 [shape = 'u32[144,128]{1,0:T(1,128)}', space=vmem, size = 0x12000, scoped, tag = 'internal scratch']
  #allocation2 [shape = 'f32[16,64]{1,0:T(8,128)}', space=vmem, size = 0x2000, scoped, tag = 'scratch operand']
  %s0 = inlined_call_operand.hbm [shape: f32[16,32], index: 0, kind: input, shape index: {}]
  %s1 = inlined_call_operand.hbm [shape: f32[32,64], index: 1, kind: input, shape index: {}]
  %s2 = inlined_call_operand.vmem [shape: f32[1,64], index: 2, kind: input, shape index: {}]
  %s3 = inlined_call_operand.hbm [shape: f32[16,64], index: 3, kind: output, shape index: {}]
  %s4 = sld [smem:[#allocation0]]
  $region38: #{tpu_custom_call.1} parent=0
    _
  %s6 = ssub.s32 1, %s4
  %s7 = scalar_select 0, %s6, %s4
  $region1: #{tpu_custom_call.1} parent=0
    #allocation3 [shape = 'u8[8192]{0}', space=vmem, size = 0x2000, scoped, tag = 'input window, operand 0, single buffered']
    #allocation4 [shape = 's32[1]{0}', space=sflag, size = 0x4, scoped, tag = 'scoped memory for tpu_custom_call.1']
    #allocation5 [shape = 's32[1]{0}', space=sflag, size = 0x4, scoped, tag = 'scoped memory for tpu_custom_call.1']
    #allocation6 [shape = 'u8[16384]{0}', space=vmem, size = 0x4000, scoped, tag = 'input window, operand 1, single buffered']
    #allocation7 [shape = 's32[1]{0}', space=sflag, size = 0x4, scoped, tag = 'scoped memory for tpu_custom_call.1']
    #allocation8 [shape = 'u8[8192]{0}', space=vmem, size = 0x2000, scoped, tag = 'output window, operand 0, single buffered']
    %8 = vsyncpa [#allocation4], 0
    %9 = vsyncpa [#allocation7], 0
    %10 = vsyncpa [#allocation5], 0
    // Predicated region
    $region2: #{tpu_custom_call.1} parent=1 // pred_check
      _
    $region3: #{tpu_custom_call.1} parent=1 // pred_check_branch
      %12 = sbr.rel (0) target = $region5
    $region4: #{tpu_custom_call.1} parent=1 // pred_region
      %s14 = ssub.s32 256, 256
      %15 = vsyncadd [#allocation4], %s14
      %s16 = sshll.u32 [#allocation3], 4
      %s17 = int_to_ptr.vmem [resolvable:$true] %s16
      %22 = dma.hbm_to_vmem [thread:$0]  %s0, 256, %s17, [#allocation4], 128, 128, 8
    $region5: #{tpu_custom_call.1} parent=1 // pred_fallthru
      _
    // Predicated region
    $region6: #{tpu_custom_call.1} parent=1 // pred_check
      _
    $region7: #{tpu_custom_call.1} parent=1 // pred_check_branch
      %24 = sbr.rel (0) target = $region9
    $region8: #{tpu_custom_call.1} parent=1 // pred_region
      %s26 = ssub.s32 512, 512
      %27 = vsyncadd [#allocation7], %s26
      %s28 = sshll.u32 [#allocation6], 4
      %s29 = int_to_ptr.vmem [resolvable:$true] %s28
      %34 = dma.hbm_to_vmem [thread:$0]  %s1, 512, %s29, [#allocation7], 128, 128, 8
    $region9: #{tpu_custom_call.1} parent=1 // pred_fallthru
      _
    // Predicated region
    $region10: #{tpu_custom_call.1} parent=1 // pred_check
      _
    $region11: #{tpu_custom_call.1} parent=1 // pred_check_branch
      %36 = sbr.rel (0) target = $region13
    $region12: #{tpu_custom_call.1} parent=1 // pred_region
      _
    $region13: #{tpu_custom_call.1} parent=1 // pred_fallthru
      _
    // Predicated region
    $region14: #{tpu_custom_call.1} parent=1 // pred_check
      _
    $region15: #{tpu_custom_call.1} parent=1 // pred_check_branch
      %38 = sbr.rel (0) target = $region17
    $region16: #{tpu_custom_call.1} parent=1 // pred_region
      %39 = dma.done [#allocation4], 256
    $region17: #{tpu_custom_call.1} parent=1 // pred_fallthru
      _
    // Predicated region
    $region18: #{tpu_custom_call.1} parent=1 // pred_check
      _
    $region19: #{tpu_custom_call.1} parent=1 // pred_check_branch
      %41 = sbr.rel (0) target = $region21
    $region20: #{tpu_custom_call.1} parent=1 // pred_region
      %42 = dma.done [#allocation7], 512
    $region21: #{tpu_custom_call.1} parent=1 // pred_fallthru
      _
    %p43 = scmp.eq.s32.totalorder 0, 0
    // Predicated region
    $region22: #{tpu_custom_call.1} parent=1 // pred_check
      %p44 = pneg %p43
    $region23: #{tpu_custom_call.1} parent=1 // pred_check_branch
      %46 = sbr.rel (%p44) target = $region25
    $region24: #{tpu_custom_call.1} parent=1 // pred_region
      %vm47 = vcmask 523264
      %48 = vst.msk [vmem:[#allocation2] sm:$0xff] %vm47, 0.0
      %49 = vst.msk [vmem:[#allocation2 + $0x8] sm:$0xff] %vm47, 0.0
    $region25: #{tpu_custom_call.1} parent=1 // pred_fallthru
      _
    %v50 = vld [vmem:[#allocation2] sm:$0xff]
    %v51 = vld [vmem:[#allocation2 + $0x8] sm:$0xff]
    %v52 = vld [vmem:[#allocation3] sm:$0xff]
    %v53 = vld [vmem:[#allocation3 + $0x8] sm:$0xff]
    %v54 = vld [vmem:[#allocation6] sm:$0xff]
    %v55 = vld [vmem:[#allocation6 + $0x8] sm:$0xff]
    %v56 = vld [vmem:[#allocation6 + $0x10] sm:$0xff]
    %v57 = vld [vmem:[#allocation6 + $0x18] sm:$0xff]
    %vm58 = vcmask 261120
    %v60 = vsel %vm58, %v52, 0
    %v63 = vsel %vm58, %v53, 0
    %65 = vmatprep.subr.mxu0 0.0
    %66 = vmatpush1.msra.mxu0 0.0
    %67 = vmatprep.subr.mxu0 0.0
    %68 = vmatpush1.msra.mxu0 0.0
    %69 = vmatprep.subr.mxu0 0.0
    %70 = vmatpush1.msra.mxu0 0.0
    %71 = vmatprep.subr.mxu0 0.0
    %72 = vmatpush1.msra.mxu0 0.0
    %73 = vmatprep.subr.mxu0 0.0
    %74 = vmatpush1.msra.mxu0 0.0
    %75 = vmatprep.subr.mxu0 0.0
    %76 = vmatpush1.msra.mxu0 0.0
    %77 = vmatprep.subr.mxu0 0.0
    %78 = vmatpush1.msra.mxu0 0.0
    %79 = vmatprep.subr.mxu0 0.0
    %80 = vmatpush1.msra.mxu0 0.0
    %81 = vmatprep.subr.mxu0 0.0
    %82 = vmatpush1.msra.mxu0 0.0
    %83 = vmatprep.subr.mxu0 0.0
    %84 = vmatpush1.msra.mxu0 0.0
    %85 = vmatprep.subr.mxu0 0.0
    %86 = vmatpush1.msra.mxu0 0.0
    %87 = vmatprep.subr.mxu0 0.0
    %88 = vmatpush1.msra.mxu0 0.0
    %89 = vmatprep.subr.mxu0 0.0
    %90 = vmatpush1.msra.mxu0 %v57
    %91 = vmatprep.subr.mxu0 0.0
    %92 = vmatpush1.msra.mxu0 %v56
    %93 = vmatprep.subr.mxu0 0.0
    %94 = vmatpush1.msra.mxu0 %v55
    %95 = vmatprep.subr.mxu0 0.0
    %96 = vmatpush1.msra.mxu0 %v54
    %97 = vmatprep.subr.mxu0 0.0
    %98 = vmatpush2.msra.mxu0 0.0
    %99 = vmatprep.subr.mxu0 0.0
    %100 = vmatpush2.msra.mxu0 0.0
    %101 = vmatprep.subr.mxu0 0.0
    %102 = vmatpush2.msra.mxu0 0.0
    %103 = vmatprep.subr.mxu0 0.0
    %104 = vmatpush2.msra.mxu0 0.0
    %105 = vmatprep.subr.mxu0 0.0
    %106 = vmatpush2.msra.mxu0 0.0
    %107 = vmatprep.subr.mxu0 0.0
    %108 = vmatpush2.msra.mxu0 0.0
    %109 = vmatprep.subr.mxu0 0.0
    %110 = vmatpush2.msra.mxu0 0.0
    %111 = vmatprep.subr.mxu0 0.0
    %112 = vmatpush2.msra.mxu0 0.0
    %113 = vmatprep.subr.mxu0 0.0
    %114 = vmatpush2.msra.mxu0 0.0
    %115 = vmatprep.subr.mxu0 0.0
    %116 = vmatpush2.msra.mxu0 0.0
    %117 = vmatprep.subr.mxu0 0.0
    %118 = vmatpush2.msra.mxu0 0.0
    %119 = vmatprep.subr.mxu0 0.0
    %120 = vmatpush2.msra.mxu0 0.0
    %121 = vmatprep.subr.mxu0 0.0
    %122 = vmatpush2.msra.mxu0 0.0
    %123 = vmatprep.subr.mxu0 0.0
    %124 = vmatpush2.msra.mxu0 0.0
    %125 = vmatprep.subr.mxu0 0.0
    %126 = vmatpush2.msra.mxu0 0.0
    %127 = vmatprep.subr.mxu0 0.0
    %128 = vmatpush2.msra.mxu0 0.0
    %129 = vmatprep.mubr.f32.mxu0 0.0
    %130 = vmatmul.mubr.f32.gmra.mxu0 %v60
    %v131 = vpop.f32.mrf.mxu0
    %v132 = vadd.f32 0.0, %v131
    %v133 = vpop.f32.mrf.mxu0
    %134 = vmatprep.mubr.f32.mxu0 0.0
    %135 = vmatmul.mubr.f32.gmra.mxu0 %v63
    %v136 = vpop.f32.mrf.mxu0
    %v137 = vadd.f32 0.0, %v136
    %v138 = vpop.f32.mrf.mxu0
    %139 = vdwg.mxu0
    %v140 = vadd.f32 %v50, %v132
    %v141 = vadd.f32 %v51, %v137
    %vm142 = vcmask 523264
    %143 = vst.msk [vmem:[#allocation2] sm:$0xff] %vm142, %v140
    %144 = vst.msk [vmem:[#allocation2 + $0x8] sm:$0xff] %vm142, %v141
    // Predicated region
    $region26: #{tpu_custom_call.1} parent=1 // pred_check
      %p145 = pneg %p43
    $region27: #{tpu_custom_call.1} parent=1 // pred_check_branch
      %147 = sbr.rel (%p145) target = $region29
    $region28: #{tpu_custom_call.1} parent=1 // pred_region
      %v148 = vld [vmem:[#allocation2] sm:$0xff]
      %v149 = vld [vmem:[#allocation2 + $0x8] sm:$0xff]
      %v150 = vld [vmem:[%s2] sm:$0x1]
      %v152 = vlaneseq
      %v153 = vshrl.u32 %v152, 7
      %v154 = vsub.s32 0, %v153
      %v155 = vrot.slane %v150, %v154
      %v157 = vadd.f32 %v148, %v155
      %v158 = vadd.f32 %v149, %v155
      %159 = vst.msk [vmem:[#allocation8] sm:$0xff] %vm142, %v157
      %160 = vst.msk [vmem:[#allocation8 + $0x8] sm:$0xff] %vm142, %v158
    $region29: #{tpu_custom_call.1} parent=1 // pred_fallthru
      _
    // Predicated region
    $region30: #{tpu_custom_call.1} parent=1 // pred_check
      _
    $region31: #{tpu_custom_call.1} parent=1 // pred_check_branch
      %162 = sbr.rel (0) target = $region33
    $region32: #{tpu_custom_call.1} parent=1 // pred_region
      %s164 = ssub.s32 256, 256
      %165 = vsyncadd [#allocation5], %s164
      %s166 = sshll.u32 [#allocation8], 4
      %s167 = int_to_ptr.vmem [resolvable:$true] %s166
      %172 = dma.vmem_to_hbm [thread:$0]  %s167, 256, %s3, [#allocation5], 128, 128, 8
    $region33: #{tpu_custom_call.1} parent=1 // pred_fallthru
      _
    // Predicated region
    $region34: #{tpu_custom_call.1} parent=1 // pred_check
      _
    $region35: #{tpu_custom_call.1} parent=1 // pred_check_branch
      %174 = sbr.rel (0) target = $region37
    $region36: #{tpu_custom_call.1} parent=1 // pred_region
      %175 = dma.done [#allocation5], 256
    $region37: #{tpu_custom_call.1} parent=1 // pred_fallthru
      _
    %176 = vsyncpa [#allocation4], 1
    %177 = vsyncpa [#allocation7], 1
    %178 = vsyncpa [#allocation5], 1

</llo_original>
